<compile_context>
chip_gen: v7x
topology: tpu7x:2x2x1
jax: 0.10.0
libtpu: 0.0.40
codegen_flags: <defaults>
</compile_context>

<pallas_src>
import math
from functools import partial

import jax
import jax.numpy as jnp
from jax.experimental import pallas as pl
from jax.experimental.pallas import tpu as pltpu


# ----------------------------- Pallas kernels -----------------------------

def _linear_kernel(x_ref, w_ref, b_ref, o_ref):
    # x: (tm, in), w: (in, out), b: (1, out)  ->  o: (tm, out)
    x = x_ref[...].astype(jnp.bfloat16)
    w = w_ref[...].astype(jnp.bfloat16)
    acc = jnp.dot(x, w, preferred_element_type=jnp.float32) + b_ref[...]
    o_ref[...] = acc.astype(o_ref.dtype)


def pallas_linear(x2d, w, b, out_dtype=jnp.float32, row_tile=512):
    """y = x @ w + b, tiled over rows with a parallel grid (double-buffered by BlockSpec)."""
    M, in_dim = x2d.shape
    out_dim = w.shape[1]
    # Row tile: full M for small inputs, else 512 (divisible by 8; ragged last tile is
    # masked by Pallas). Weights/bias use a constant block index -> fetched once.
    tm = M if M <= row_tile else row_tile
    grid = (pl.cdiv(M, tm),)
    return pl.pallas_call(
        _linear_kernel,
        out_shape=jax.ShapeDtypeStruct((M, out_dim), out_dtype),
        grid=grid,
        in_specs=[
            pl.BlockSpec((tm, in_dim), lambda i: (i, 0)),
            pl.BlockSpec((in_dim, out_dim), lambda i: (0, 0)),
            pl.BlockSpec((1, out_dim), lambda i: (0, 0)),
        ],
        out_specs=pl.BlockSpec((tm, out_dim), lambda i: (i, 0)),
        compiler_params=pltpu.CompilerParams(dimension_semantics=("parallel",)),
    )(x2d, w, b.reshape(1, out_dim))


def _performer_attention_kernel(qkv_ref, proj_ref, o_ref, *, heads, dim_head, nb_features):
    # qkv_ref: (1, n, 3*heads*dim_head) bf16 for one batch element (q | k | v, head-major)
    # proj_ref: (dim_head, nb_features) bf16, already scaled by dim_head**-0.25
    # o_ref:   (1, n, heads*dim_head) bf16   -- 'b n (h d)' merged-head layout
    inner = heads * dim_head
    proj = proj_ref[...]                                     # (d, m) bf16

    ratio = float(nb_features) ** (-0.5)
    diag_scale = 0.5 / math.sqrt(float(dim_head))            # 0.5 * (d**-0.25)**2
    eps = 1e-4

    # Heads are unrolled statically inside one grid step (amortizes per-step overhead).
    # For production configs a further win is packing all heads' contractions into one MXU
    # pass via a block-diagonal projection matrix; kept per-head here for clarity/robustness.
    for h in range(heads):
        q_h = qkv_ref[0, :, 0 * inner + h * dim_head: 0 * inner + (h + 1) * dim_head]  # (n, d)
        k_h = qkv_ref[0, :, 1 * inner + h * dim_head: 1 * inner + (h + 1) * dim_head]
        v_h = qkv_ref[0, :, 2 * inner + h * dim_head: 2 * inner + (h + 1) * dim_head]

        # softmax_kernel feature maps: bf16 dots on the MXU, f32 exp/normalization path.
        q_dash = jnp.dot(q_h, proj, preferred_element_type=jnp.float32)   # (n, m)
        k_dash = jnp.dot(k_h, proj, preferred_element_type=jnp.float32)   # (n, m)

        qf = q_h.astype(jnp.float32)
        kf = k_h.astype(jnp.float32)
        diag_q = jnp.sum(qf * qf, axis=-1, keepdims=True) * diag_scale    # (n, 1)
        diag_k = jnp.sum(kf * kf, axis=-1, keepdims=True) * diag_scale    # (n, 1)

        # is_query=True: subtract per-row max, eps added outside exp (faithful to reference).
        q_prime = ratio * (
            jnp.exp(q_dash - diag_q - jnp.max(q_dash, axis=-1, keepdims=True)) + eps
        )
        # is_query=False: no max subtraction, eps inside exp (faithful to reference;
        # known numerical-stability caveat of the FCPE/Performer code being ported).
        k_prime = ratio * jnp.exp(k_dash - diag_k + eps)

        # linear_attention(q', k', v)
        context = jnp.einsum('nm,nd->md', k_prime.astype(jnp.bfloat16), v_h,
                             preferred_element_type=jnp.float32)          # (m, d)
        k_sum = jnp.sum(k_prime, axis=0, keepdims=True)                   # (1, m)
        denom = jnp.sum(q_prime * k_sum, axis=-1, keepdims=True) + 1e-8   # (n, 1) > 0
        num = jnp.dot(q_prime.astype(jnp.bfloat16), context.astype(jnp.bfloat16),
                      preferred_element_type=jnp.float32)                 # (n, d)
        out_h = num * pl.reciprocal(denom, approx=True)                   # EUP divide

        o_ref[0, :, h * dim_head:(h + 1) * dim_head] = out_h.astype(o_ref.dtype)


def pallas_performer_attention(qkv, proj_t, heads, dim_head):
    # qkv: (b, n, 3*inner) bf16;  proj_t: (dim_head, nb_features) bf16
    b, n, three_inner = qkv.shape
    inner = heads * dim_head
    d, m = proj_t.shape
    kernel = partial(_performer_attention_kernel,
                     heads=heads, dim_head=dim_head, nb_features=m)
    # NOTE: for very long sequences, add an "arbitrary" n-chunk axis that first accumulates
    # context/k_sum in VMEM scratch, then streams q chunks (bounds VMEM on v7x's 64 MiB).
    return pl.pallas_call(
        kernel,
        out_shape=jax.ShapeDtypeStruct((b, n, inner), jnp.bfloat16),
        grid=(b,),
        in_specs=[
            pl.BlockSpec((1, n, three_inner), lambda i: (i, 0, 0)),
            pl.BlockSpec((d, m), lambda i: (0, 0)),
        ],
        out_specs=pl.BlockSpec((1, n, inner), lambda i: (i, 0, 0)),
        compiler_params=pltpu.CompilerParams(dimension_semantics=("parallel",)),
    )(qkv, proj_t)


# ----------------------------- parameter setup (glue) -----------------------------

def gaussian_orthogonal_random_matrix(key, nb_rows, nb_cols):
    nb_full_blocks = nb_rows // nb_cols
    keys = jax.random.split(key, nb_full_blocks + 2)
    blocks = []
    for i in range(nb_full_blocks):
        unstructured = jax.random.normal(keys[i], (nb_cols, nb_cols), dtype=jnp.float32)
        qm, _ = jnp.linalg.qr(unstructured)
        blocks.append(qm.T)
    remaining = nb_rows - nb_full_blocks * nb_cols
    if remaining > 0:
        unstructured = jax.random.normal(keys[nb_full_blocks], (nb_cols, nb_cols),
                                         dtype=jnp.float32)
        qm, _ = jnp.linalg.qr(unstructured)
        blocks.append(qm.T[:remaining])
    multiplier = jnp.linalg.norm(
        jax.random.normal(keys[-1], (nb_rows, nb_cols), dtype=jnp.float32), axis=1)
    return jnp.diag(multiplier) @ jnp.concatenate(blocks, axis=0)  # (nb_rows, nb_cols)


def init_self_attention_params(key, dim, heads, dim_head, nb_features):
    inner_dim = dim_head * heads
    ks = jax.random.split(key, 9)

    def linear_init(kw, kb, fan_in, fan_out):
        bound = 1.0 / math.sqrt(fan_in)
        w = jax.random.uniform(kw, (fan_in, fan_out), minval=-bound, maxval=bound,
                               dtype=jnp.float32)
        b = jax.random.uniform(kb, (fan_out,), minval=-bound, maxval=bound,
                               dtype=jnp.float32)
        return w, b

    wq, bq = linear_init(ks[0], ks[1], dim, inner_dim)
    wk, bk = linear_init(ks[2], ks[3], dim, inner_dim)
    wv, bv = linear_init(ks[4], ks[5], dim, inner_dim)
    wo, bo = linear_init(ks[6], ks[7], inner_dim, dim)

    # projection_matrix buffer: (nb_features, dim_head); stored transposed, bf16, and with
    # the data_normalizer (dim_head**-0.25) folded in (saves per-element multiplies in-kernel).
    proj = gaussian_orthogonal_random_matrix(ks[8], nb_features, dim_head)

    return {
        # Fused QKV projection weights: one pallas_call instead of three.
        "w_qkv": jnp.concatenate([wq, wk, wv], axis=1),   # (dim, 3*inner_dim)
        "b_qkv": jnp.concatenate([bq, bk, bv], axis=0),   # (3*inner_dim,)
        "wo": wo, "bo": bo,
        "proj_t": (proj.T * (float(dim_head) ** -0.25)).astype(jnp.bfloat16),  # (d, m)
    }


# ----------------------------- forward -----------------------------

def self_attention_forward(params, x, heads, dim_head):
    # x: (b, n, dim)  -- layout: (batch, seq, channels)
    b, n, dim = x.shape
    inner_dim = heads * dim_head

    x2d = x.reshape(b * n, dim)
    # Fused Q/K/V projection (bf16 activations out -> half HBM traffic to the attention kernel)
    qkv = pallas_linear(x2d, params["w_qkv"], params["b_qkv"],
                        out_dtype=jnp.bfloat16)                 # (b*n, 3*inner_dim)
    qkv = qkv.reshape(b, n, 3 * inner_dim)                      # free reshape, no transpose

    # Head split + merge happens inside the kernel -> output is already 'b n (h d)'
    attn = pallas_performer_attention(qkv, params["proj_t"], heads, dim_head)  # (b,n,inner) bf16

    out = pallas_linear(attn.reshape(b * n, inner_dim), params["wo"], params["bo"],
                        out_dtype=jnp.float32)                  # dropout(p=0.0) == identity
    return out.reshape(b, n, dim)


# ----------------------------- main -----------------------------

if __name__ == "__main__":
    # small shapes consistent with the module
    batch, seq, dim = 2, 16, 32
    heads, dim_head = 4, 8
    nb_features = int(dim_head * math.log(dim_head))  # default(nb_features, d*ln(d)) = 16

    key = jax.random.PRNGKey(0)
    kx, kp = jax.random.split(key)
    x = jax.random.normal(kx, (batch, seq, dim), dtype=jnp.float32)
    params = init_self_attention_params(kp, dim, heads, dim_head, nb_features)

    out = self_attention_forward(params, x, heads, dim_head)
    out = jax.block_until_ready(out)

    assert out.shape == (batch, seq, dim)
    assert bool(jnp.all(jnp.isfinite(out)))
    print("KERNEL_OK")
</pallas_src>

<mosaic_0001>
module attributes {stable_mosaic.version = 11 : i64} {
  func.func @_linear_kernel(%arg0: i32, %arg1: memref<32x32xf32, #tpu.memory_space<vmem>>, %arg2: memref<32x96xf32, #tpu.memory_space<vmem>>, %arg3: memref<1x96xf32, #tpu.memory_space<vmem>>, %arg4: memref<32x96xbf16, #tpu.memory_space<vmem>>) attributes {dimension_semantics = [#tpu.dimension_semantics<parallel>], iteration_bounds = array<i64: 1>, scalar_prefetch = 0 : i64, scratch_operands = 0 : i64, tpu.core_type = #tpu.core_type<tc>, window_params = [{transform_indices = @transform_0, window_bounds = array<i64: 32, 32>}, {pipeline_mode = #tpu.pipeline_mode<synchronous>, transform_indices = @transform_1, window_bounds = array<i64: 32, 96>}, {pipeline_mode = #tpu.pipeline_mode<synchronous>, transform_indices = @transform_2, window_bounds = array<i64: 1, 96>}, {transform_indices = @transform_3, window_bounds = array<i64: 32, 96>}]} {
    %c0 = arith.constant 0 : index
    %c0_0 = arith.constant 0 : index
    %0 = vector.load %arg1[%c0, %c0_0] : memref<32x32xf32, #tpu.memory_space<vmem>>, vector<32x32xf32>
    %1 = arith.truncf %0 : vector<32x32xf32> to vector<32x32xbf16>
    %c0_1 = arith.constant 0 : index
    %c0_2 = arith.constant 0 : index
    %2 = vector.load %arg2[%c0_1, %c0_2] : memref<32x96xf32, #tpu.memory_space<vmem>>, vector<32x96xf32>
    %3 = arith.truncf %2 : vector<32x96xf32> to vector<32x96xbf16>
    %cst = arith.constant dense<0.000000e+00> : vector<32x96xf32>
    %4 = tpu.matmul %1, %3, %cst {dimension_numbers = #tpu.dot_dimension_numbers<[1], [0], [0], [1], [0, 0, 1, 1], [], []>} : vector<32x32xbf16>, vector<32x96xbf16>, vector<32x96xf32> -> vector<32x96xf32>
    %c0_3 = arith.constant 0 : index
    %c0_4 = arith.constant 0 : index
    %5 = vector.load %arg3[%c0_3, %c0_4] : memref<1x96xf32, #tpu.memory_space<vmem>>, vector<1x96xf32>
    %6 = vector.broadcast %5 : vector<1x96xf32> to vector<32x96xf32>
    %7 = arith.addf %4, %6 : vector<32x96xf32>
    %8 = arith.truncf %7 : vector<32x96xf32> to vector<32x96xbf16>
    %c0_5 = arith.constant 0 : index
    %c0_6 = arith.constant 0 : index
    %9 = vector.load %arg4[%c0_5, %c0_6] : memref<32x96xbf16, #tpu.memory_space<vmem>>, vector<32x96xbf16>
    tpu.vector_store %arg4[%c0_5, %c0_6], %8 {strides = array<i32>} : memref<32x96xbf16, #tpu.memory_space<vmem>>, vector<32x96xbf16>,
    return
  }
  func.func @transform_0(%arg0: i32) -> (i32, i32) {
    %c0_i32 = arith.constant 0 : i32
    %c0_i32_0 = arith.constant 0 : i32
    return %arg0, %c0_i32 : i32, i32
  }
  func.func @transform_1(%arg0: i32) -> (i32, i32) {
    %c0_i32 = arith.constant 0 : i32
    %c0_i32_0 = arith.constant 0 : i32
    %c0_i32_1 = arith.constant 0 : i32
    return %c0_i32, %c0_i32_0 : i32, i32
  }
  func.func @transform_2(%arg0: i32) -> (i32, i32) {
    %c0_i32 = arith.constant 0 : i32
    %c0_i32_0 = arith.constant 0 : i32
    %c0_i32_1 = arith.constant 0 : i32
    return %c0_i32, %c0_i32_0 : i32, i32
  }
  func.func @transform_3(%arg0: i32) -> (i32, i32) {
    %c0_i32 = arith.constant 0 : i32
    %c0_i32_0 = arith.constant 0 : i32
    return %arg0, %c0_i32 : i32, i32
  }
}

</mosaic_0001>

<llo_original>
// kernel: tpu_custom_call.1
$region0: #{tpu_custom_call.1}
  #allocation0 [shape = 'u32[]', space=smem, size = 0x4, offset = 0x4, fixed_abs, tag = 'smem constant byte address 0x4 - core index']
  #allocation1 [shape = 'u32[144,128]{1,0:T(1,128)}', space=vmem, size = 0x12000, scoped, tag = 'internal scratch']
  %s0 = inlined_call_operand.hbm [shape: f32[32,32], index: 0, kind: input, shape index: {}]
  %s1 = inlined_call_operand.hbm [shape: f32[32,96], index: 1, kind: input, shape index: {}]
  %s2 = inlined_call_operand.vmem [shape: f32[1,96], index: 2, kind: input, shape index: {}]
  %s3 = inlined_call_operand.hbm [shape: bf16[32,96], index: 3, kind: output, shape index: {}]
  %s4 = sld [smem:[#allocation0]]
  $region30: #{tpu_custom_call.1} parent=0
    _
  %s6 = ssub.s32 1, %s4
  %s7 = scalar_select 0, %s6, %s4
  $region1: #{tpu_custom_call.1} parent=0
    #allocation2 [shape = 'u8[16384]{0}', space=vmem, size = 0x4000, scoped, tag = 'input window, operand 0, single buffered']
    #allocation3 [shape = 's32[1]{0}', space=sflag, size = 0x4, scoped, tag = 'scoped memory for tpu_custom_call.1']
    #allocation4 [shape = 's32[1]{0}', space=sflag, size = 0x4, scoped, tag = 'scoped memory for tpu_custom_call.1']
    #allocation5 [shape = 'u8[16384]{0}', space=vmem, size = 0x4000, scoped, tag = 'input window, operand 1, single buffered']
    #allocation6 [shape = 's32[1]{0}', space=sflag, size = 0x4, scoped, tag = 'scoped memory for tpu_custom_call.1']
    #allocation7 [shape = 'u8[8192]{0}', space=vmem, size = 0x2000, scoped, tag = 'output window, operand 0, single buffered']
    %8 = vsyncpa [#allocation3], 0
    %9 = vsyncpa [#allocation6], 0
    %10 = vsyncpa [#allocation4], 0
    // Predicated region
    $region2: #{tpu_custom_call.1} parent=1 // pred_check
      _
    $region3: #{tpu_custom_call.1} parent=1 // pred_check_branch
      %12 = sbr.rel (0) target = $region5
    $region4: #{tpu_custom_call.1} parent=1 // pred_region
      %s14 = ssub.s32 512, 512
      %15 = vsyncadd [#allocation3], %s14
      %s16 = sshll.u32 [#allocation2], 4
      %s17 = int_to_ptr.vmem [resolvable:$true] %s16
      %22 = dma.hbm_to_vmem [thread:$0]  %s0, 512, %s17, [#allocation3], 128, 128, 8
    $region5: #{tpu_custom_call.1} parent=1 // pred_fallthru
      _
    // Predicated region
    $region6: #{tpu_custom_call.1} parent=1 // pred_check
      _
    $region7: #{tpu_custom_call.1} parent=1 // pred_check_branch
      %24 = sbr.rel (0) target = $region9
    $region8: #{tpu_custom_call.1} parent=1 // pred_region
      %s26 = ssub.s32 512, 512
      %27 = vsyncadd [#allocation6], %s26
      %s28 = sshll.u32 [#allocation5], 4
      %s29 = int_to_ptr.vmem [resolvable:$true] %s28
      %34 = dma.hbm_to_vmem [thread:$0]  %s1, 512, %s29, [#allocation6], 128, 128, 8
    $region9: #{tpu_custom_call.1} parent=1 // pred_fallthru
      _
    // Predicated region
    $region10: #{tpu_custom_call.1} parent=1 // pred_check
      _
    $region11: #{tpu_custom_call.1} parent=1 // pred_check_branch
      %36 = sbr.rel (0) target = $region13
    $region12: #{tpu_custom_call.1} parent=1 // pred_region
      _
    $region13: #{tpu_custom_call.1} parent=1 // pred_fallthru
      _
    // Predicated region
    $region14: #{tpu_custom_call.1} parent=1 // pred_check
      _
    $region15: #{tpu_custom_call.1} parent=1 // pred_check_branch
      %38 = sbr.rel (0) target = $region17
    $region16: #{tpu_custom_call.1} parent=1 // pred_region
      %39 = dma.done [#allocation3], 512
    $region17: #{tpu_custom_call.1} parent=1 // pred_fallthru
      _
    // Predicated region
    $region18: #{tpu_custom_call.1} parent=1 // pred_check
      _
    $region19: #{tpu_custom_call.1} parent=1 // pred_check_branch
      %41 = sbr.rel (0) target = $region21
    $region20: #{tpu_custom_call.1} parent=1 // pred_region
      %42 = dma.done [#allocation6], 512
    $region21: #{tpu_custom_call.1} parent=1 // pred_fallthru
      _
    %v44 = vld [vmem:[#allocation2] sm:$0xff]
    %v45 = vld [vmem:[#allocation2 + $0x8] sm:$0xff]
    %v46 = vld [vmem:[#allocation2 + $0x10] sm:$0xff]
    %v47 = vld [vmem:[#allocation2 + $0x18] sm:$0xff]
    %v48 = vpack.c.bf16 %v45, %v44
    %v49 = vpack.c.bf16 %v47, %v46
    %v50 = vld [vmem:[#allocation5] sm:$0xff]
    %v51 = vld [vmem:[#allocation5 + $0x8] sm:$0xff]
    %v52 = vld [vmem:[#allocation5 + $0x10] sm:$0xff]
    %v53 = vld [vmem:[#allocation5 + $0x18] sm:$0xff]
    %v54 = vpack.c.bf16 %v51, %v50
    %v55 = vpack.c.bf16 %v53, %v52
    %v56 = vld [vmem:[%s2] sm:$0x1]
    %v58 = vlaneseq
    %v59 = vshrl.u32 %v58, 7
    %v60 = vsub.s32 0, %v59
    %v61 = vrot.slane %v56, %v60
    %vm63 = vcmask 261120
    %v65 = vsel %vm63, %v48, 0
    %v68 = vsel %vm63, %v49, 0
    %70 = vmatprep.subr.bf16.mxu0 0
    %71 = vmatpush1.bf16.msra.mxu0 %v54
    %72 = vmatprep.subr.bf16.mxu0 0
    %73 = vmatpush1.bf16.msra.mxu0 %v55
    %74 = vmatprep.subr.bf16.mxu0 0
    %75 = vmatpush1.bf16.msra.mxu0 0
    %76 = vmatprep.subr.bf16.mxu0 0
    %77 = vmatpush1.bf16.msra.mxu0 0
    %78 = vmatprep.subr.bf16.mxu0 0
    %79 = vmatpush1.bf16.msra.mxu0 0
    %80 = vmatprep.subr.bf16.mxu0 0
    %81 = vmatpush1.bf16.msra.mxu0 0
    %82 = vmatprep.subr.bf16.mxu0 0
    %83 = vmatpush1.bf16.msra.mxu0 0
    %84 = vmatprep.subr.bf16.mxu0 0
    %85 = vmatpush1.bf16.msra.mxu0 0
    %86 = vmatprep.subr.bf16.mxu0 0
    %87 = vmatpush1.bf16.msra.mxu0 0
    %88 = vmatprep.subr.bf16.mxu0 0
    %89 = vmatpush1.bf16.msra.mxu0 0
    %90 = vmatprep.subr.bf16.mxu0 0
    %91 = vmatpush1.bf16.msra.mxu0 0
    %92 = vmatprep.subr.bf16.mxu0 0
    %93 = vmatpush1.bf16.msra.mxu0 0
    %94 = vmatprep.subr.bf16.mxu0 0
    %95 = vmatpush1.bf16.msra.mxu0 0
    %96 = vmatprep.subr.bf16.mxu0 0
    %97 = vmatpush1.bf16.msra.mxu0 0
    %98 = vmatprep.subr.bf16.mxu0 0
    %99 = vmatpush1.bf16.msra.mxu0 0
    %100 = vmatprep.subr.bf16.mxu0 0
    %101 = vmatpush1.bf16.msra.mxu0 0
    %102 = vmatprep.mubr.bf16.mxu0 0
    %103 = vmatmul.mubr.bf16.gmra.mrb[0].mxu0 %v65
    %v104 = vpop.f32.mrb[0].mxu0
    %v105 = vadd.f32 %v61, %v104
    %v106 = vpop.f32.mrb[0].mxu0
    %v107 = vpop.f32.mrb[0].mxu0
    %v108 = vadd.f32 %v61, %v107
    %v109 = vpop.f32.mrb[0].mxu0
    %110 = vmatprep.mubr.bf16.mxu0 0
    %111 = vmatmul.mubr.bf16.gmra.mrb[0].mxu0 %v68
    %v112 = vpop.f32.mrb[0].mxu0
    %v113 = vadd.f32 %v61, %v112
    %v114 = vpop.f32.mrb[0].mxu0
    %v115 = vpop.f32.mrb[0].mxu0
    %v116 = vadd.f32 %v61, %v115
    %v117 = vpop.f32.mrb[0].mxu0
    %118 = vdwg.mxu0
    %v119 = vpack.c.bf16 %v108, %v105
    %v120 = vpack.c.bf16 %v116, %v113
    %v123 = vunpack.c.l.b16 %v119
    %v124 = vunpack.c.h.b16 %v119
    %v125 = vunpack.c.l.b16 %v120
    %v126 = vunpack.c.h.b16 %v120
    %v127 = vpack.c.b16 %v123, %v123
    %v128 = vpack.c.b16 %v124, %v124
    %v129 = vpack.c.b16 %v125, %v125
    %v130 = vpack.c.b16 %v126, %v126
    %vm135 = vcmask 781312
    %136 = vst.msk [vmem:[#allocation7] sm:$0xf] %vm135, %v127
    %137 = vst.msk [vmem:[#allocation7 + $0x4] sm:$0xf] %vm135, %v128
    %138 = vst.msk [vmem:[#allocation7 + $0x8] sm:$0xf] %vm135, %v129
    %139 = vst.msk [vmem:[#allocation7 + $0xc] sm:$0xf] %vm135, %v130
    // Predicated region
    $region22: #{tpu_custom_call.1} parent=1 // pred_check
      _
    $region23: #{tpu_custom_call.1} parent=1 // pred_check_branch
      %141 = sbr.rel (0) target = $region25
    $region24: #{tpu_custom_call.1} parent=1 // pred_region
      %s143 = ssub.s32 256, 256
      %144 = vsyncadd [#allocation4], %s143
      %s145 = sshll.u32 [#allocation7], 4
      %s146 = int_to_ptr.vmem [resolvable:$true] %s145
      %151 = dma.vmem_to_hbm [thread:$0]  %s146, 256, %s3, [#allocation4], 64, 64, 4
    $region25: #{tpu_custom_call.1} parent=1 // pred_fallthru
      _
    // Predicated region
    $region26: #{tpu_custom_call.1} parent=1 // pred_check
      _
    $region27: #{tpu_custom_call.1} parent=1 // pred_check_branch
      %153 = sbr.rel (0) target = $region29
    $region28: #{tpu_custom_call.1} parent=1 // pred_region
      %154 = dma.done [#allocation4], 256
    $region29: #{tpu_custom_call.1} parent=1 // pred_fallthru
      _
    %155 = vsyncpa [#allocation3], 1
    %156 = vsyncpa [#allocation6], 1
    %157 = vsyncpa [#allocation4], 1

</llo_original>
